<compile_context>
chip_gen: v7x
topology: tpu7x:2x2x1
jax: 0.10.0
libtpu: 0.0.40
codegen_flags: <defaults>
</compile_context>

<pallas_src>
import jax
import jax.numpy as jnp
from jax.experimental import pallas as pl
from jax.experimental.pallas import tpu as pltpu

LN_EPS = 1e-5  # torch.nn.LayerNorm default


def _patch_embed_kernel(x_ref, wconv_ref, bconv_ref, wlin_ref, blin_ref,
                        g2_ref, pos_ref, o_ref):
    # x_ref: (C, Hp, P, Wp, P) -- one raw NCHW image, dims split per patch.
    C, Hp, P, Wp, _ = x_ref.shape
    N = Hp * Wp

    x = x_ref[...].astype(jnp.float32)            # (C, Hp, P, Wp, P)
    w = wconv_ref[...]                            # (C, P, P)

    # --- depthwise patchify conv (fused, VPU) ---------------------------------
    # conv[c, hp, wp] = sum_{i,j} x[c, hp, i, wp, j] * w[c, i, j]
    prod = x * w[:, None, :, None, :]             # broadcast over (Hp, Wp)
    s = jnp.sum(prod, axis=2)                     # sum over kernel row i -> (C, Hp, Wp, P)
    conv = jnp.sum(s, axis=-1)                    # sum over kernel col j -> (C, Hp, Wp)

    # -> (C, N) "rows in lanes", add conv bias.
    h = conv.reshape(C, N) + bconv_ref[...]       # bconv: (C, 1)

    # --- LayerNorm over channels (one-pass stats, f32; affine folded into linear)
    mu = jnp.mean(h, axis=0, keepdims=True)                       # (1, N)
    var = jnp.mean(h * h, axis=0, keepdims=True) - mu * mu
    hn = (h - mu) * jax.lax.rsqrt(var + LN_EPS)                   # (C, N)

    # --- Linear C -> D on the MXU (LN1 gamma/beta pre-folded into w/b) --------
    y = jnp.dot(hn.T, wlin_ref[...], preferred_element_type=jnp.float32)  # (N, D)
    y = y + blin_ref[...]                                         # (1, D)

    # --- LayerNorm over D (one-pass stats; LN2 bias pre-folded into pos) ------
    mu2 = jnp.mean(y, axis=-1, keepdims=True)
    var2 = jnp.mean(y * y, axis=-1, keepdims=True) - mu2 * mu2
    yn = (y - mu2) * jax.lax.rsqrt(var2 + LN_EPS)

    # --- scale + positional embedding, store ----------------------------------
    o_ref[...] = (yn * g2_ref[...] + pos_ref[...]).astype(o_ref.dtype)


def patch_embedding(x, params, patch_size, *, out_dtype=None):
    """x: (B, C, H, W) float32, NCHW (PyTorch convention). Returns (B, N, D)."""
    B, C, H, W = x.shape
    P = patch_size
    assert H % P == 0 and W % P == 0
    Hp, Wp = H // P, W // P
    N = Hp * Wp
    D = params["w_lin"].shape[1]
    out_dtype = x.dtype if out_dtype is None else out_dtype

    # Free (pure dim-split, layout-preserving) reshape: no HBM traffic.
    x6 = x.reshape(B, C, Hp, P, Wp, P)

    # Host-side param prep (tiny, done once).
    w_conv = params["w_conv"].reshape(C, P, P).astype(jnp.float32)
    b_conv = params["b_conv"].reshape(C, 1).astype(jnp.float32)
    g1 = params["ln1_g"]
    b1 = params["ln1_b"]
    # Fold LN1 affine into the linear layer (exact algebra).
    w_lin_eff = (g1[:, None] * params["w_lin"]).astype(jnp.float32)          # (C, D)
    b_lin_eff = (b1 @ params["w_lin"] + params["b_lin"]).reshape(1, D)
    b_lin_eff = b_lin_eff.astype(jnp.float32)
    g2 = params["ln2_g"].reshape(1, D).astype(jnp.float32)
    # Fold LN2 bias into the positional embedding (exact algebra).
    pos_eff = (params["pos"].reshape(N, D) + params["ln2_b"]).astype(jnp.float32)

    def resident(arr):
        # Grid-invariant full block: stays in VMEM across all grid steps.
        return pl.BlockSpec(arr.shape, lambda b, _nd=arr.ndim: (0,) * _nd)

    out = pl.pallas_call(
        _patch_embed_kernel,
        out_shape=jax.ShapeDtypeStruct((B, N, D), out_dtype),
        grid=(B,),
        in_specs=[
            # One raw image per grid step; trailing dims equal full array dims.
            pl.BlockSpec((None, C, Hp, P, Wp, P),
                         lambda b: (b, 0, 0, 0, 0, 0)),
            resident(w_conv), resident(b_conv),
            resident(w_lin_eff), resident(b_lin_eff),
            resident(g2), resident(pos_eff),
        ],
        out_specs=pl.BlockSpec((None, N, D), lambda b: (b, 0, 0)),
        compiler_params=pltpu.CompilerParams(
            dimension_semantics=("parallel",),
            vmem_limit_bytes=32 * 1024 * 1024,  # safe on v5e/v6e/v7x; blocks are small
        ),
    )(x6, w_conv, b_conv, w_lin_eff, b_lin_eff, g2, pos_eff)
    return out


def patch_embedding_ref(x, params, patch_size):
    """Pure-JAX reference mirroring the PyTorch forward (no folding, HIGHEST precision)."""
    B, C, H, W = x.shape
    P = patch_size
    Hp, Wp = H // P, W // P
    N = Hp * Wp

    xp = x.reshape(B, C, Hp, P, Wp, P)
    xp = jnp.transpose(xp, (0, 2, 4, 3, 5, 1)).reshape(B, N, P * P, C)
    w_conv = params["w_conv"].reshape(C, P * P).T
    conv = jnp.einsum("bnpc,pc->bnc", xp, w_conv,
                      precision=jax.lax.Precision.HIGHEST) + params["b_conv"]

    def ln(v, g, b):
        mu = jnp.mean(v, -1, keepdims=True)
        var = jnp.mean((v - mu) ** 2, -1, keepdims=True)
        return (v - mu) / jnp.sqrt(var + LN_EPS) * g + b

    h = ln(conv, params["ln1_g"], params["ln1_b"])
    y = jnp.dot(h, params["w_lin"],
                precision=jax.lax.Precision.HIGHEST) + params["b_lin"]
    y = ln(y, params["ln2_g"], params["ln2_b"])
    return y + params["pos"][:, :N]


def init_params(key, in_channels, patch_dim, patch_size, num_patches):
    C, P, D, N = in_channels, patch_size, patch_dim, num_patches
    ks = jax.random.split(key, 5)
    return {
        # nn.Conv2d(C, C, P, stride=P, groups=C): weight (C, 1, P, P), bias (C,)
        "w_conv": jax.random.normal(ks[0], (C, 1, P, P), jnp.float32) * 0.2,
        "b_conv": jax.random.normal(ks[1], (C,), jnp.float32) * 0.1,
        # LayerNorm(C)
        "ln1_g": jnp.ones((C,), jnp.float32),
        "ln1_b": jnp.zeros((C,), jnp.float32),
        # nn.Linear(C, D): stored transposed as (C, D) for x @ W
        "w_lin": jax.random.normal(ks[2], (C, D), jnp.float32) * 0.2,
        "b_lin": jax.random.normal(ks[3], (D,), jnp.float32) * 0.1,
        # LayerNorm(D)
        "ln2_g": jnp.ones((D,), jnp.float32),
        "ln2_b": jnp.zeros((D,), jnp.float32),
        # pos_embedding: (1, N, D)
        "pos": jax.random.normal(ks[4], (1, N, D), jnp.float32),
    }


if __name__ == "__main__":
    B, C, H, W = 2, 4, 16, 16
    patch_size = 4
    patch_dim = 32
    num_patches = (H // patch_size) * (W // patch_size)  # 16

    key = jax.random.PRNGKey(0)
    kx, kp = jax.random.split(key)
    x = jax.random.normal(kx, (B, C, H, W), jnp.float32)
    params = init_params(kp, C, patch_dim, patch_size, num_patches)

    ref = patch_embedding_ref(x, params, patch_size)

    # f32 output path: strict correctness check.
    out = patch_embedding(x, params, patch_size)
    out = jax.block_until_ready(out)
    assert out.shape == (B, num_patches, patch_dim)
    assert jnp.allclose(out, ref, atol=2e-3, rtol=2e-3), "f32 mismatch vs reference"

    # bf16 output path (cuts store-side HBM traffic); compute stays f32 in-kernel.
    out_bf16 = patch_embedding(x, params, patch_size, out_dtype=jnp.bfloat16)
    out_bf16 = jax.block_until_ready(out_bf16)
    assert out_bf16.shape == (B, num_patches, patch_dim)
    assert float(jnp.max(jnp.abs(out_bf16.astype(jnp.float32) - ref))) < 0.1, \
        "bf16-output path diverged"

    print("KERNEL_OK")
</pallas_src>

<mosaic_0001>
module attributes {stable_mosaic.version = 11 : i64} {
  func.func @_patch_embed_kernel(%arg0: i32, %arg1: memref<1x4x4x4x4x4xf32, #tpu.memory_space<vmem>>, %arg2: memref<4x4x4xf32, #tpu.memory_space<vmem>>, %arg3: memref<4x1xf32, #tpu.memory_space<vmem>>, %arg4: memref<4x32xf32, #tpu.memory_space<vmem>>, %arg5: memref<1x32xf32, #tpu.memory_space<vmem>>, %arg6: memref<1x32xf32, #tpu.memory_space<vmem>>, %arg7: memref<16x32xf32, #tpu.memory_space<vmem>>, %arg8: memref<1x16x32xf32, #tpu.memory_space<vmem>>) attributes {dimension_semantics = [#tpu.dimension_semantics<parallel>], iteration_bounds = array<i64: 2>, scalar_prefetch = 0 : i64, scratch_operands = 0 : i64, tpu.core_type = #tpu.core_type<tc>, window_params = [{transform_indices = @transform_0, window_bounds = array<i64: 1, 4, 4, 4, 4, 4>}, {pipeline_mode = #tpu.pipeline_mode<synchronous>, transform_indices = @transform_1, window_bounds = array<i64: 4, 4, 4>}, {pipeline_mode = #tpu.pipeline_mode<synchronous>, transform_indices = @transform_2, window_bounds = array<i64: 4, 1>}, {pipeline_mode = #tpu.pipeline_mode<synchronous>, transform_indices = @transform_3, window_bounds = array<i64: 4, 32>}, {pipeline_mode = #tpu.pipeline_mode<synchronous>, transform_indices = @transform_4, window_bounds = array<i64: 1, 32>}, {pipeline_mode = #tpu.pipeline_mode<synchronous>, transform_indices = @transform_5, window_bounds = array<i64: 1, 32>}, {pipeline_mode = #tpu.pipeline_mode<synchronous>, transform_indices = @transform_6, window_bounds = array<i64: 16, 32>}, {transform_indices = @transform_7, window_bounds = array<i64: 1, 16, 32>}]} {
    %c0 = arith.constant 0 : index
    %c0_0 = arith.constant 0 : index
    %c0_1 = arith.constant 0 : index
    %c0_2 = arith.constant 0 : index
    %c0_3 = arith.constant 0 : index
    %c0_4 = arith.constant 0 : index
    %0 = vector.load %arg1[%c0, %c0_0, %c0_1, %c0_2, %c0_3, %c0_4] : memref<1x4x4x4x4x4xf32, #tpu.memory_space<vmem>>, vector<1x4x4x4x4x4xf32>
    %1 = vector.shape_cast %0 : vector<1x4x4x4x4x4xf32> to vector<4x4x4x4x4xf32>
    %c0_5 = arith.constant 0 : index
    %c0_6 = arith.constant 0 : index
    %c0_7 = arith.constant 0 : index
    %2 = vector.load %arg2[%c0_5, %c0_6, %c0_7] : memref<4x4x4xf32, #tpu.memory_space<vmem>>, vector<4x4x4xf32>
    %3 = vector.shape_cast %2 : vector<4x4x4xf32> to vector<4x1x4x1x4xf32>
    %4 = vector.broadcast %3 : vector<4x1x4x1x4xf32> to vector<4x4x4x4x4xf32>
    %5 = arith.mulf %1, %4 : vector<4x4x4x4x4xf32>
    %cst = arith.constant dense<0.000000e+00> : vector<4x4x4x4xf32>
    %6 = vector.multi_reduction <add>, %5, %cst [2] : vector<4x4x4x4x4xf32> to vector<4x4x4x4xf32>
    %cst_8 = arith.constant dense<0.000000e+00> : vector<4x4x4xf32>
    %7 = vector.multi_reduction <add>, %6, %cst_8 [3] : vector<4x4x4x4xf32> to vector<4x4x4xf32>
    %8 = vector.shape_cast %7 : vector<4x4x4xf32> to vector<4x16xf32>
    %c0_9 = arith.constant 0 : index
    %c0_10 = arith.constant 0 : index
    %9 = vector.load %arg3[%c0_9, %c0_10] : memref<4x1xf32, #tpu.memory_space<vmem>>, vector<4x1xf32>
    %10 = vector.broadcast %9 : vector<4x1xf32> to vector<4x16xf32>
    %11 = arith.addf %8, %10 : vector<4x16xf32>
    %cst_11 = arith.constant dense<0.000000e+00> : vector<16xf32>
    %12 = vector.multi_reduction <add>, %11, %cst_11 [0] : vector<4x16xf32> to vector<16xf32>
    %13 = vector.shape_cast %12 : vector<16xf32> to vector<1x16xf32>
    %cst_12 = arith.constant 4.000000e+00 : f32
    %14 = vector.broadcast %cst_12 : f32 to vector<1x16xf32>
    %15 = arith.divf %13, %14 : vector<1x16xf32>
    %16 = arith.mulf %11, %11 : vector<4x16xf32>
    %cst_13 = arith.constant dense<0.000000e+00> : vector<16xf32>
    %17 = vector.multi_reduction <add>, %16, %cst_13 [0] : vector<4x16xf32> to vector<16xf32>
    %18 = vector.shape_cast %17 : vector<16xf32> to vector<1x16xf32>
    %cst_14 = arith.constant 4.000000e+00 : f32
    %19 = vector.broadcast %cst_14 : f32 to vector<1x16xf32>
    %20 = arith.divf %18, %19 : vector<1x16xf32>
    %21 = arith.mulf %15, %15 : vector<1x16xf32>
    %22 = arith.subf %20, %21 : vector<1x16xf32>
    %23 = vector.broadcast %15 : vector<1x16xf32> to vector<4x16xf32>
    %24 = arith.subf %11, %23 : vector<4x16xf32>
    %cst_15 = arith.constant 9.99999974E-6 : f32
    %25 = vector.broadcast %cst_15 : f32 to vector<1x16xf32>
    %26 = arith.addf %22, %25 : vector<1x16xf32>
    %27 = math.rsqrt %26 : vector<1x16xf32>
    %28 = vector.broadcast %27 : vector<1x16xf32> to vector<4x16xf32>
    %29 = arith.mulf %24, %28 : vector<4x16xf32>
    %30 = tpu.transpose %29, [1, 0] : vector<4x16xf32> -> vector<16x4xf32>
    %c0_16 = arith.constant 0 : index
    %c0_17 = arith.constant 0 : index
    %31 = vector.load %arg4[%c0_16, %c0_17] : memref<4x32xf32, #tpu.memory_space<vmem>>, vector<4x32xf32>
    %cst_18 = arith.constant dense<0.000000e+00> : vector<16x32xf32>
    %32 = tpu.matmul %30, %31, %cst_18 {dimension_numbers = #tpu.dot_dimension_numbers<[1], [0], [0], [1], [0, 0, 1, 1], [], []>} : vector<16x4xf32>, vector<4x32xf32>, vector<16x32xf32> -> vector<16x32xf32>
    %c0_19 = arith.constant 0 : index
    %c0_20 = arith.constant 0 : index
    %33 = vector.load %arg5[%c0_19, %c0_20] : memref<1x32xf32, #tpu.memory_space<vmem>>, vector<1x32xf32>
    %34 = vector.broadcast %33 : vector<1x32xf32> to vector<16x32xf32>
    %35 = arith.addf %32, %34 : vector<16x32xf32>
    %cst_21 = arith.constant dense<0.000000e+00> : vector<16xf32>
    %36 = vector.multi_reduction <add>, %35, %cst_21 [1] : vector<16x32xf32> to vector<16xf32>
    %37 = vector.shape_cast %36 : vector<16xf32> to vector<16x1xf32>
    %cst_22 = arith.constant 3.200000e+01 : f32
    %38 = vector.broadcast %cst_22 : f32 to vector<16x1xf32>
    %39 = arith.divf %37, %38 : vector<16x1xf32>
    %40 = arith.mulf %35, %35 : vector<16x32xf32>
    %cst_23 = arith.constant dense<0.000000e+00> : vector<16xf32>
    %41 = vector.multi_reduction <add>, %40, %cst_23 [1] : vector<16x32xf32> to vector<16xf32>
    %42 = vector.shape_cast %41 : vector<16xf32> to vector<16x1xf32>
    %cst_24 = arith.constant 3.200000e+01 : f32
    %43 = vector.broadcast %cst_24 : f32 to vector<16x1xf32>
    %44 = arith.divf %42, %43 : vector<16x1xf32>
    %45 = arith.mulf %39, %39 : vector<16x1xf32>
    %46 = arith.subf %44, %45 : vector<16x1xf32>
    %47 = vector.broadcast %39 : vector<16x1xf32> to vector<16x32xf32>
    %48 = arith.subf %35, %47 : vector<16x32xf32>
    %cst_25 = arith.constant 9.99999974E-6 : f32
    %49 = vector.broadcast %cst_25 : f32 to vector<16x1xf32>
    %50 = arith.addf %46, %49 : vector<16x1xf32>
    %51 = math.rsqrt %50 : vector<16x1xf32>
    %52 = vector.broadcast %51 : vector<16x1xf32> to vector<16x32xf32>
    %53 = arith.mulf %48, %52 : vector<16x32xf32>
    %c0_26 = arith.constant 0 : index
    %c0_27 = arith.constant 0 : index
    %54 = vector.load %arg6[%c0_26, %c0_27] : memref<1x32xf32, #tpu.memory_space<vmem>>, vector<1x32xf32>
    %55 = vector.broadcast %54 : vector<1x32xf32> to vector<16x32xf32>
    %56 = arith.mulf %53, %55 : vector<16x32xf32>
    %c0_28 = arith.constant 0 : index
    %c0_29 = arith.constant 0 : index
    %57 = vector.load %arg7[%c0_28, %c0_29] : memref<16x32xf32, #tpu.memory_space<vmem>>, vector<16x32xf32>
    %58 = arith.addf %56, %57 : vector<16x32xf32>
    %c0_30 = arith.constant 0 : index
    %c0_31 = arith.constant 0 : index
    %c0_32 = arith.constant 0 : index
    %59 = vector.load %arg8[%c0_30, %c0_31, %c0_32] : memref<1x16x32xf32, #tpu.memory_space<vmem>>, vector<1x16x32xf32>
    %60 = vector.shape_cast %59 : vector<1x16x32xf32> to vector<16x32xf32>
    %61 = vector.shape_cast %58 : vector<16x32xf32> to vector<1x16x32xf32>
    tpu.vector_store %arg8[%c0_30, %c0_31, %c0_32], %61 {strides = array<i32>} : memref<1x16x32xf32, #tpu.memory_space<vmem>>, vector<1x16x32xf32>,
    return
  }
  func.func @transform_0(%arg0: i32) -> (i32, i32, i32, i32, i32, i32) {
    %c0_i32 = arith.constant 0 : i32
    %c0_i32_0 = arith.constant 0 : i32
    %c0_i32_1 = arith.constant 0 : i32
    %c0_i32_2 = arith.constant 0 : i32
    %c0_i32_3 = arith.constant 0 : i32
    %c0_i32_4 = arith.constant 0 : i32
    return %arg0, %c0_i32, %c0_i32_0, %c0_i32_1, %c0_i32_2, %c0_i32_3 : i32, i32, i32, i32, i32, i32
  }
  func.func @transform_1(%arg0: i32) -> (i32, i32, i32) {
    %c0_i32 = arith.constant 0 : i32
    %c0_i32_0 = arith.constant 0 : i32
    %c0_i32_1 = arith.constant 0 : i32
    %c0_i32_2 = arith.constant 0 : i32
    return %c0_i32, %c0_i32_0, %c0_i32_1 : i32, i32, i32
  }
  func.func @transform_2(%arg0: i32) -> (i32, i32) {
    %c0_i32 = arith.constant 0 : i32
    %c0_i32_0 = arith.constant 0 : i32
    %c0_i32_1 = arith.constant 0 : i32
    return %c0_i32, %c0_i32_0 : i32, i32
  }
  func.func @transform_3(%arg0: i32) -> (i32, i32) {
    %c0_i32 = arith.constant 0 : i32
    %c0_i32_0 = arith.constant 0 : i32
    %c0_i32_1 = arith.constant 0 : i32
    return %c0_i32, %c0_i32_0 : i32, i32
  }
  func.func @transform_4(%arg0: i32) -> (i32, i32) {
    %c0_i32 = arith.constant 0 : i32
    %c0_i32_0 = arith.constant 0 : i32
    %c0_i32_1 = arith.constant 0 : i32
    return %c0_i32, %c0_i32_0 : i32, i32
  }
  func.func @transform_5(%arg0: i32) -> (i32, i32) {
    %c0_i32 = arith.constant 0 : i32
    %c0_i32_0 = arith.constant 0 : i32
    %c0_i32_1 = arith.constant 0 : i32
    return %c0_i32, %c0_i32_0 : i32, i32
  }
  func.func @transform_6(%arg0: i32) -> (i32, i32) {
    %c0_i32 = arith.constant 0 : i32
    %c0_i32_0 = arith.constant 0 : i32
    %c0_i32_1 = arith.constant 0 : i32
    return %c0_i32, %c0_i32_0 : i32, i32
  }
  func.func @transform_7(%arg0: i32) -> (i32, i32, i32) {
    %c0_i32 = arith.constant 0 : i32
    %c0_i32_0 = arith.constant 0 : i32
    %c0_i32_1 = arith.constant 0 : i32
    return %arg0, %c0_i32, %c0_i32_0 : i32, i32, i32
  }
}

</mosaic_0001>

<llo_original>
// kernel: tpu_custom_call.1
$region0: #{tpu_custom_call.1}
  #allocation0 [shape = 'u32[]', space=smem, size = 0x4, offset = 0x4, fixed_abs, tag = 'smem constant byte address 0x4 - core index']
  #allocation1 [shape = 'u32[144,128]{1,0:T(1,128)}', space=vmem, size = 0x12000, scoped, tag = 'internal scratch']
  %s0 = inlined_call_operand.hbm [shape: f32[2,4,4,4,4,4], index: 0, kind: input, shape index: {}]
  %s1 = inlined_call_operand.hbm [shape: f32[4,4,4], index: 1, kind: input, shape index: {}]
  %s2 = inlined_call_operand.vmem [shape: f32[4,1], index: 2, kind: input, shape index: {}]
  %s3 = inlined_call_operand.vmem [shape: f32[4,32], index: 3, kind: input, shape index: {}]
  %s4 = inlined_call_operand.vmem [shape: f32[1,32], index: 4, kind: input, shape index: {}]
  %s5 = inlined_call_operand.vmem [shape: f32[1,32], index: 5, kind: input, shape index: {}]
  %s6 = inlined_call_operand.vmem [shape: f32[16,32], index: 6, kind: input, shape index: {}]
  %s7 = inlined_call_operand.hbm [shape: f32[2,16,32], index: 7, kind: output, shape index: {}]
  %s8 = sld [smem:[#allocation0]]
  $region69: #{tpu_custom_call.1} parent=0
    _
  %s10 = ssub.s32 1, %s8
  %s11 = scalar_select 0, %s10, %s8
  $region1: #{tpu_custom_call.1} parent=0
    #allocation2 [shape = 'u8[262144]{0}', space=vmem, size = 0x40000, scoped, tag = 'input window, operand 0']
    #allocation3 [shape = 's32[2]{0}', space=sflag, size = 0x8, scoped, tag = 'scoped memory for tpu_custom_call.1']
    #allocation4 [shape = 's32[2]{0}', space=sflag, size = 0x8, scoped, tag = 'scoped memory for tpu_custom_call.1']
    #allocation5 [shape = 'u8[8192]{0}', space=vmem, size = 0x2000, scoped, tag = 'input window, operand 1, single buffered']
    #allocation6 [shape = 's32[1]{0}', space=sflag, size = 0x4, scoped, tag = 'scoped memory for tpu_custom_call.1']
    #allocation7 [shape = 'u8[16384]{0}', space=vmem, size = 0x4000, scoped, tag = 'output window, operand 0']
    %12 = vsyncpa [#allocation3], 0
    %s13 = scalar_lea.sflag [#allocation3], 1
    %14 = vsyncpa %s13, 0
    %15 = vsyncpa [#allocation6], 0
    %16 = vsyncpa [#allocation4], 0
    %s17 = scalar_lea.sflag [#allocation4], 1
    %18 = vsyncpa %s17, 0
    loop: start=0, step=1, limit=4
    $region2: #{tpu_custom_call.1} parent=1 // loop_pre_header
      _
    $region3: #{tpu_custom_call.1} parent=1 // loop_header
      %s20 = sphi 0, %s24
      %p21 = scmp.ge.s32.totalorder %s20, 4
      %s30 = sphi 0, %s32
      %s33 = sphi 0, %s30
      %s34 = sphi 0, %s33
      %s50 = sphi 0, %s34
      %s54 = sphi 0, %s54
      %s56 = sphi 0, %s54
      %s57 = sphi 0, %s56
      %s71 = sphi 0, %s57
      %s75 = sphi 0, %s75
      %s77 = sphi 0, %s75
      %s78 = sphi 0, %s77
      %s92 = sphi 0, %s78
      %s96 = sphi 0, %s96
      %s98 = sphi 0, %s96
      %s99 = sphi 0, %s98
      %s113 = sphi 0, %s99
      %s117 = sphi 0, %s117
      %s119 = sphi 0, %s117
      %s120 = sphi 0, %s119
      %s134 = sphi 0, %s120
      %s138 = sphi 0, %s138
      %s140 = sphi 0, %s138
      %s141 = sphi 0, %s140
      %s155 = sphi 0, %s141
      %s159 = sphi 0, %s159
      %s161 = sphi 0, %s159
      %s162 = sphi 0, %s161
      %s176 = sphi 0, %s162
      %s182 = sphi 0, %s184
      %s185 = sphi 0, %s182
      %s186 = sphi 0, %s185
      %s202 = sphi 0, %s186
    $region4: #{tpu_custom_call.1} parent=1 // loop_header_branch
      %23 = sbr.rel (%p21) target = $region8
    $region5: #{tpu_custom_call.1} parent=1 // loop_body
      %s25 = ssub.s32 %s20, 1
      %s26 = ssub.s32 %s20, 2
      %s27 = sadd.s32 %s20, 1
      %s28 = ssub.s32 %s20, %s27
      %p29 = scmp.eq.s32.totalorder %s28, 0
      %s31 = sadd.s32 %s30, 1
      %s32 = scalar_select %p29, %s30, %s31
      %p35 = pneg %p29
      %p36 = scmp.eq.s32.totalorder %s20, 1
      %p37 = por %p35, %p36
      %p38 = scmp.ne.s32.totalorder %s30, %s33
      %p39 = scmp.eq.s32.totalorder %s20, 0
      %p40 = por %p38, %p39
      %p41 = scmp.ne.s32.totalorder %s30, %s33
      %p42 = scmp.eq.s32.totalorder %s25, 1
      %p43 = por %p41, %p42
      %p44 = scmp.ne.s32.totalorder %s33, %s34
      %p45 = scmp.eq.s32.totalorder %s25, 0
      %p46 = por %p44, %p45
      %p47 = scmp.ne.s32.totalorder %s33, %s34
      %p48 = scmp.eq.s32.totalorder %s26, 1
      %p49 = por %p47, %p48
      %p51 = scmp.ne.s32.totalorder %s34, %s50
      %p52 = scmp.eq.s32.totalorder %s26, 0
      %p53 = por %p51, %p52
      %s55 = sadd.s32 %s54, 1
      %p58 = scmp.eq.s32.totalorder %s20, 1
      %p59 = scmp.ne.s32.totalorder %s54, %s56
      %p60 = scmp.eq.s32.totalorder %s20, 0
      %p61 = por %p59, %p60
      %p62 = scmp.ne.s32.totalorder %s54, %s56
      %p63 = scmp.eq.s32.totalorder %s25, 1
      %p64 = por %p62, %p63
      %p65 = scmp.ne.s32.totalorder %s56, %s57
      %p66 = scmp.eq.s32.totalorder %s25, 0
      %p67 = por %p65, %p66
      %p68 = scmp.ne.s32.totalorder %s56, %s57
      %p69 = scmp.eq.s32.totalorder %s26, 1
      %p70 = por %p68, %p69
      %p72 = scmp.ne.s32.totalorder %s57, %s71
      %p73 = scmp.eq.s32.totalorder %s26, 0
      %p74 = por %p72, %p73
      %s76 = sadd.s32 %s75, 1
      %p79 = scmp.eq.s32.totalorder %s20, 1
      %p80 = scmp.ne.s32.totalorder %s75, %s77
      %p81 = scmp.eq.s32.totalorder %s20, 0
      %p82 = por %p80, %p81
      %p83 = scmp.ne.s32.totalorder %s75, %s77
      %p84 = scmp.eq.s32.totalorder %s25, 1
      %p85 = por %p83, %p84
      %p86 = scmp.ne.s32.totalorder %s77, %s78
      %p87 = scmp.eq.s32.totalorder %s25, 0
      %p88 = por %p86, %p87
      %p89 = scmp.ne.s32.totalorder %s77, %s78
      %p90 = scmp.eq.s32.totalorder %s26, 1
      %p91 = por %p89, %p90
      %p93 = scmp.ne.s32.totalorder %s78, %s92
      %p94 = scmp.eq.s32.totalorder %s26, 0
      %p95 = por %p93, %p94
      %s97 = sadd.s32 %s96, 1
      %p100 = scmp.eq.s32.totalorder %s20, 1
      %p101 = scmp.ne.s32.totalorder %s96, %s98
      %p102 = scmp.eq.s32.totalorder %s20, 0
      %p103 = por %p101, %p102
      %p104 = scmp.ne.s32.totalorder %s96, %s98
      %p105 = scmp.eq.s32.totalorder %s25, 1
      %p106 = por %p104, %p105
      %p107 = scmp.ne.s32.totalorder %s98, %s99
      %p108 = scmp.eq.s32.totalorder %s25, 0
      %p109 = por %p107, %p108
      %p110 = scmp.ne.s32.totalorder %s98, %s99
      %p111 = scmp.eq.s32.totalorder %s26, 1
      %p112 = por %p110, %p111
      %p114 = scmp.ne.s32.totalorder %s99, %s113
      %p115 = scmp.eq.s32.totalorder %s26, 0
      %p116 = por %p114, %p115
      %s118 = sadd.s32 %s117, 1
      %p121 = scmp.eq.s32.totalorder %s20, 1
      %p122 = scmp.ne.s32.totalorder %s117, %s119
      %p123 = scmp.eq.s32.totalorder %s20, 0
      %p124 = por %p122, %p123
      %p125 = scmp.ne.s32.totalorder %s117, %s119
      %p126 = scmp.eq.s32.totalorder %s25, 1
      %p127 = por %p125, %p126
      %p128 = scmp.ne.s32.totalorder %s119, %s120
      %p129 = scmp.eq.s32.totalorder %s25, 0
      %p130 = por %p128, %p129
      %p131 = scmp.ne.s32.totalorder %s119, %s120
      %p132 = scmp.eq.s32.totalorder %s26, 1
      %p133 = por %p131, %p132
      %p135 = scmp.ne.s32.totalorder %s120, %s134
      %p136 = scmp.eq.s32.totalorder %s26, 0
      %p137 = por %p135, %p136
      %s139 = sadd.s32 %s138, 1
      %p142 = scmp.eq.s32.totalorder %s20, 1
      %p143 = scmp.ne.s32.totalorder %s138, %s140
      %p144 = scmp.eq.s32.totalorder %s20, 0
      %p145 = por %p143, %p144
      %p146 = scmp.ne.s32.totalorder %s138, %s140
      %p147 = scmp.eq.s32.totalorder %s25, 1
      %p148 = por %p146, %p147
      %p149 = scmp.ne.s32.totalorder %s140, %s141
      %p150 = scmp.eq.s32.totalorder %s25, 0
      %p151 = por %p149, %p150
      %p152 = scmp.ne.s32.totalorder %s140, %s141
      %p153 = scmp.eq.s32.totalorder %s26, 1
      %p154 = por %p152, %p153
      %p156 = scmp.ne.s32.totalorder %s141, %s155
      %p157 = scmp.eq.s32.totalorder %s26, 0
      %p158 = por %p156, %p157
      %s160 = sadd.s32 %s159, 1
      %p163 = scmp.eq.s32.totalorder %s20, 1
      %p164 = scmp.ne.s32.totalorder %s159, %s161
      %p165 = scmp.eq.s32.totalorder %s20, 0
      %p166 = por %p164, %p165
      %p167 = scmp.ne.s32.totalorder %s159, %s161
      %p168 = scmp.eq.s32.totalorder %s25, 1
      %p169 = por %p167, %p168
      %p170 = scmp.ne.s32.totalorder %s161, %s162
      %p171 = scmp.eq.s32.totalorder %s25, 0
      %p172 = por %p170, %p171
      %p173 = scmp.ne.s32.totalorder %s161, %s162
      %p174 = scmp.eq.s32.totalorder %s26, 1
      %p175 = por %p173, %p174
      %p177 = scmp.ne.s32.totalorder %s162, %s176
      %p178 = scmp.eq.s32.totalorder %s26, 0
      %p179 = por %p177, %p178
      %s180 = ssub.s32 %s20, %s27
      %p181 = scmp.eq.s32.totalorder %s180, 0
      %s183 = sadd.s32 %s182, 1
      %s184 = scalar_select %p181, %s182, %s183
      %p187 = pneg %p181
      %p188 = scmp.eq.s32.totalorder %s20, 1
      %p189 = por %p187, %p188
      %p190 = scmp.ne.s32.totalorder %s182, %s185
      %p191 = scmp.eq.s32.totalorder %s20, 0
      %p192 = por %p190, %p191
      %p193 = scmp.ne.s32.totalorder %s182, %s185
      %p194 = scmp.eq.s32.totalorder %s25, 1
      %p195 = por %p193, %p194
      %p196 = scmp.ne.s32.totalorder %s185, %s186
      %p197 = scmp.eq.s32.totalorder %s25, 0
      %p198 = por %p196, %p197
      %p199 = scmp.ne.s32.totalorder %s185, %s186
      %p200 = scmp.eq.s32.totalorder %s26, 1
      %p201 = por %p199, %p200
      %p203 = scmp.ne.s32.totalorder %s186, %s202
      %p204 = scmp.eq.s32.totalorder %s26, 0
      %p205 = por %p203, %p204
      %p206 = scmp.le.s32.totalorder 1, %s20
      %p207 = scmp.lt.s32.totalorder %s20, 3
      %p208 = pnand %p206, %p207
      %p209 = pneg %p208
      // Predicated region
      $region9: #{tpu_custom_call.1} parent=5 // pred_check
        _
      $region10: #{tpu_custom_call.1} parent=5 // pred_check_branch
        %211 = sbr.rel (%p208) target = $region12
      $region11: #{tpu_custom_call.1} parent=5 // pred_region
        %s212 = ssub.s32 %s20, 1
        // Predicated region
        $region13: #{tpu_custom_call.1} parent=11 // pred_check
          %p213 = pneg %p67
        $region14: #{tpu_custom_call.1} parent=11 // pred_check_branch
          %215 = sbr.rel (%p213) target = $region16
        $region15: #{tpu_custom_call.1} parent=11 // pred_region
          %s217 = ssub.s32 256, 256
          %218 = vsyncadd [#allocation6], %s217
          %s219 = sshll.u32 [#allocation5], 4
          %s220 = int_to_ptr.vmem [resolvable:$true] %s219
          %225 = dma.hbm_to_vmem [thread:$0]  %s1, 256, %s220, [#allocation6], 64, 64, 4
        $region16: #{tpu_custom_call.1} parent=11 // pred_fallthru
          _
        // Predicated region
        $region17: #{tpu_custom_call.1} parent=11 // pred_check
          %p226 = pneg %p88
        $region18: #{tpu_custom_call.1} parent=11 // pred_check_branch
          %228 = sbr.rel (%p226) target = $region20
        $region19: #{tpu_custom_call.1} parent=11 // pred_region
          _
        $region20: #{tpu_custom_call.1} parent=11 // pred_fallthru
          _
        // Predicated region
        $region21: #{tpu_custom_call.1} parent=11 // pred_check
          %p229 = pneg %p109
        $region22: #{tpu_custom_call.1} parent=11 // pred_check_branch
          %231 = sbr.rel (%p229) target = $region24
        $region23: #{tpu_custom_call.1} parent=11 // pred_region
          _
        $region24: #{tpu_custom_call.1} parent=11 // pred_fallthru
          _
        // Predicated region
        $region25: #{tpu_custom_call.1} parent=11 // pred_check
          %p232 = pneg %p130
        $region26: #{tpu_custom_call.1} parent=11 // pred_check_branch
          %234 = sbr.rel (%p232) target = $region28
        $region27: #{tpu_custom_call.1} parent=11 // pred_region
          _
        $region28: #{tpu_custom_call.1} parent=11 // pred_fallthru
          _
        // Predicated region
        $region29: #{tpu_custom_call.1} parent=11 // pred_check
          %p235 = pneg %p151
        $region30: #{tpu_custom_call.1} parent=11 // pred_check_branch
          %237 = sbr.rel (%p235) target = $region32
        $region31: #{tpu_custom_call.1} parent=11 // pred_region
          _
        $region32: #{tpu_custom_call.1} parent=11 // pred_fallthru
          _
        // Predicated region
        $region33: #{tpu_custom_call.1} parent=11 // pred_check
          %p238 = pneg %p172
        $region34: #{tpu_custom_call.1} parent=11 // pred_check_branch
          %240 = sbr.rel (%p238) target = $region36
        $region35: #{tpu_custom_call.1} parent=11 // pred_region
          _
        $region36: #{tpu_custom_call.1} parent=11 // pred_fallthru
          _
      $region12: #{tpu_custom_call.1} parent=5 // pred_fallthru
        _
      %p241 = scmp.lt.s32.totalorder %s20, 2
      // Predicated region
      $region37: #{tpu_custom_call.1} parent=5 // pred_check
        %p242 = pneg %p241
      $region38: #{tpu_custom_call.1} parent=5 // pred_check_branch
        %244 = sbr.rel (%p242) target = $region40
      $region39: #{tpu_custom_call.1} parent=5 // pred_region
        // Predicated region
        $region41: #{tpu_custom_call.1} parent=39 // pred_check
          %p245 = pneg %p40
        $region42: #{tpu_custom_call.1} parent=39 // pred_check_branch
          %247 = sbr.rel (%p245) target = $region44
        $region43: #{tpu_custom_call.1} parent=39 // pred_region
          %s248 = sand.u32 %s30, 1
          %s249 = scalar_lea.sflag [#allocation3], %s248
          %s250 = sand.u32 %s30, 1
          %s251 = smul.addr %s250, 256
          %s252 = scalar_lea.vmem [#allocation2], %s251
          %s254 = ssub.s32 4096, 4096
          %255 = vsyncadd %s249, %s254
          %s256 = smul.addr %s20, 64
          %s257 = smul.addr %s256, 64
          %s258 = scalar_lea.hbm %s0, %s257
          %s259 = sshll.u32 %s252, 4
          %s260 = int_to_ptr.vmem [resolvable:$true] %s259
          %265 = dma.hbm_to_vmem [thread:$0]  %s258, 4096, %s260, %s249, 64, 64, 4
        $region44: #{tpu_custom_call.1} parent=39 // pred_fallthru
          _
      $region40: #{tpu_custom_call.1} parent=5 // pred_fallthru
        _
      %p266 = scmp.le.s32.totalorder 1, %s20
      %p267 = scmp.lt.s32.totalorder %s20, 3
      %p268 = pnand %p266, %p267
      %p269 = pneg %p268
      // Predicated region
      $region45: #{tpu_custom_call.1} parent=5 // pred_check
        _
      $region46: #{tpu_custom_call.1} parent=5 // pred_check_branch
        %271 = sbr.rel (%p268) target = $region48
      $region47: #{tpu_custom_call.1} parent=5 // pred_region
        %s272 = ssub.s32 %s20, 1
        %s273 = sand.u32 %s33, 1
        %s274 = scalar_lea.sflag [#allocation3], %s273
        %s275 = sand.u32 %s33, 1
        %s276 = smul.addr %s275, 256
        %s277 = scalar_lea.vmem [#allocation2], %s276
        // Predicated region
        $region49: #{tpu_custom_call.1} parent=47 // pred_check
          %p278 = pneg %p46
        $region50: #{tpu_custom_call.1} parent=47 // pred_check_branch
          %280 = sbr.rel (%p278) target = $region52
        $region51: #{tpu_custom_call.1} parent=47 // pred_region
          %281 = dma.done %s274, 4096
        $region52: #{tpu_custom_call.1} parent=47 // pred_fallthru
          _
        // Predicated region
        $region53: #{tpu_custom_call.1} parent=47 // pred_check
          %p282 = pneg %p67
        $region54: #{tpu_custom_call.1} parent=47 // pred_check_branch
          %284 = sbr.rel (%p282) target = $region56
        $region55: #{tpu_custom_call.1} parent=47 // pred_region
          %285 = dma.done [#allocation6], 256
        $region56: #{tpu_custom_call.1} parent=47 // pred_fallthru
          _
        %s286 = sand.u32 %s33, 1
        %s287 = scalar_lea.sflag [#allocation3], %s286
        %s288 = sand.u32 %s33, 1
        %s289 = smul.addr %s288, 256
        %s290 = scalar_lea.vmem [#allocation2], %s289
        %p291 = pneg %p46
        %p292 = pneg %p43
        %p293 = pneg %p67
        %p294 = pneg %p64
        %p295 = pneg %p88
        %p296 = pneg %p85
        %p297 = pneg %p109
        %p298 = pneg %p106
        %p299 = pneg %p130
        %p300 = pneg %p127
        %p301 = pneg %p151
        %p302 = pneg %p148
        %p303 = pneg %p172
        %p304 = pneg %p169
        %p305 = pneg %p198
        %p306 = pneg %p195
        %s307 = sand.u32 %s185, 1
        %s308 = scalar_lea.sflag [#allocation4], %s307
        %s309 = sand.u32 %s185, 1
        %s310 = smul.addr %s309, 16
        %s311 = scalar_lea.vmem [#allocation7], %s310
        %v312 = vld [vmem:[%s277] sm:$0xf]
        %v313 = vld [vmem:[%s277 + $0x4] sm:$0xf]
        %v314 = vld [vmem:[%s277 + $0x8] sm:$0xf]
        %v315 = vld [vmem:[%s277 + $0xc] sm:$0xf]
        %v316 = vld [vmem:[%s277 + $0x10] sm:$0xf]
        %v317 = vld [vmem:[%s277 + $0x14] sm:$0xf]
        %v318 = vld [vmem:[%s277 + $0x18] sm:$0xf]
        %v319 = vld [vmem:[%s277 + $0x1c] sm:$0xf]
        %v320 = vld [vmem:[%s277 + $0x20] sm:$0xf]
        %v321 = vld [vmem:[%s277 + $0x24] sm:$0xf]
        %v322 = vld [vmem:[%s277 + $0x28] sm:$0xf]
        %v323 = vld [vmem:[%s277 + $0x2c] sm:$0xf]
        %v324 = vld [vmem:[%s277 + $0x30] sm:$0xf]
        %v325 = vld [vmem:[%s277 + $0x34] sm:$0xf]
        %v326 = vld [vmem:[%s277 + $0x38] sm:$0xf]
        %v327 = vld [vmem:[%s277 + $0x3c] sm:$0xf]
        %v328 = vld [vmem:[%s277 + $0x40] sm:$0xf]
        %v329 = vld [vmem:[%s277 + $0x44] sm:$0xf]
        %v330 = vld [vmem:[%s277 + $0x48] sm:$0xf]
        %v331 = vld [vmem:[%s277 + $0x4c] sm:$0xf]
        %v332 = vld [vmem:[%s277 + $0x50] sm:$0xf]
        %v333 = vld [vmem:[%s277 + $0x54] sm:$0xf]
        %v334 = vld [vmem:[%s277 + $0x58] sm:$0xf]
        %v335 = vld [vmem:[%s277 + $0x5c] sm:$0xf]
        %v336 = vld [vmem:[%s277 + $0x60] sm:$0xf]
        %v337 = vld [vmem:[%s277 + $0x64] sm:$0xf]
        %v338 = vld [vmem:[%s277 + $0x68] sm:$0xf]
        %v339 = vld [vmem:[%s277 + $0x6c] sm:$0xf]
        %v340 = vld [vmem:[%s277 + $0x70] sm:$0xf]
        %v341 = vld [vmem:[%s277 + $0x74] sm:$0xf]
        %v342 = vld [vmem:[%s277 + $0x78] sm:$0xf]
        %v343 = vld [vmem:[%s277 + $0x7c] sm:$0xf]
        %v344 = vld [vmem:[%s277 + $0x80] sm:$0xf]
        %v345 = vld [vmem:[%s277 + $0x84] sm:$0xf]
        %v346 = vld [vmem:[%s277 + $0x88] sm:$0xf]
        %v347 = vld [vmem:[%s277 + $0x8c] sm:$0xf]
        %v348 = vld [vmem:[%s277 + $0x90] sm:$0xf]
        %v349 = vld [vmem:[%s277 + $0x94] sm:$0xf]
        %v350 = vld [vmem:[%s277 + $0x98] sm:$0xf]
        %v351 = vld [vmem:[%s277 + $0x9c] sm:$0xf]
        %v352 = vld [vmem:[%s277 + $0xa0] sm:$0xf]
        %v353 = vld [vmem:[%s277 + $0xa4] sm:$0xf]
        %v354 = vld [vmem:[%s277 + $0xa8] sm:$0xf]
        %v355 = vld [vmem:[%s277 + $0xac] sm:$0xf]
        %v356 = vld [vmem:[%s277 + $0xb0] sm:$0xf]
        %v357 = vld [vmem:[%s277 + $0xb4] sm:$0xf]
        %v358 = vld [vmem:[%s277 + $0xb8] sm:$0xf]
        %v359 = vld [vmem:[%s277 + $0xbc] sm:$0xf]
        %v360 = vld [vmem:[%s277 + $0xc0] sm:$0xf]
        %v361 = vld [vmem:[%s277 + $0xc4] sm:$0xf]
        %v362 = vld [vmem:[%s277 + $0xc8] sm:$0xf]
        %v363 = vld [vmem:[%s277 + $0xcc] sm:$0xf]
        %v364 = vld [vmem:[%s277 + $0xd0] sm:$0xf]
        %v365 = vld [vmem:[%s277 + $0xd4] sm:$0xf]
        %v366 = vld [vmem:[%s277 + $0xd8] sm:$0xf]
        %v367 = vld [vmem:[%s277 + $0xdc] sm:$0xf]
        %v368 = vld [vmem:[%s277 + $0xe0] sm:$0xf]
        %v369 = vld [vmem:[%s277 + $0xe4] sm:$0xf]
        %v370 = vld [vmem:[%s277 + $0xe8] sm:$0xf]
        %v371 = vld [vmem:[%s277 + $0xec] sm:$0xf]
        %v372 = vld [vmem:[%s277 + $0xf0] sm:$0xf]
        %v373 = vld [vmem:[%s277 + $0xf4] sm:$0xf]
        %v374 = vld [vmem:[%s277 + $0xf8] sm:$0xf]
        %v375 = vld [vmem:[%s277 + $0xfc] sm:$0xf]
        %v376 = vld [vmem:[#allocation5] sm:$0xf]
        %v377 = vld [vmem:[#allocation5 + $0x4] sm:$0xf]
        %v378 = vld [vmem:[#allocation5 + $0x8] sm:$0xf]
        %v379 = vld [vmem:[#allocation5 + $0xc] sm:$0xf]
        %v385 = vunpack.c.l.s4 1966171168
        %v386 = vunpack.c.0.s8 %v385
        %v387 = vlaneseq
        %v388 = vshrl.u32 %v387, 7
        %v389 = vsub.s32 %v386, %v388
        %v390 = vrot.slane %v376, %v389
        %v391 = vcombine.high %v390, %v390
        %v393 = vunpack.c.l.s4 1966171168
        %v394 = vunpack.c.0.s8 %v393
        %v395 = vlaneseq
        %v396 = vshrl.u32 %v395, 7
        %v397 = vsub.s32 %v394, %v396
        %v398 = vrot.slane %v390, %v397
        %v400 = vunpack.c.l.s4 1966171168
        %v401 = vunpack.c.0.s8 %v400
        %v402 = vlaneseq
        %v403 = vshrl.u32 %v402, 7
        %v404 = vsub.s32 %v401, %v403
        %v405 = vrot.slane %v391, %v404
        %v406 = vcombine.high %v398, %v398
        %v407 = vcombine.high %v405, %v405
        %v409 = vunpack.c.l.s4 1966171168
        %v410 = vunpack.c.0.s8 %v409
        %v411 = vlaneseq
        %v412 = vshrl.u32 %v411, 7
        %v413 = vsub.s32 %v410, %v412
        %v414 = vrot.slane %v377, %v413
        %v415 = vcombine.high %v414, %v414
        %v417 = vunpack.c.l.s4 1966171168
        %v418 = vunpack.c.0.s8 %v417
        %v419 = vlaneseq
        %v420 = vshrl.u32 %v419, 7
        %v421 = vsub.s32 %v418, %v420
        %v422 = vrot.slane %v414, %v421
        %v424 = vunpack.c.l.s4 1966171168
        %v425 = vunpack.c.0.s8 %v424
        %v426 = vlaneseq
        %v427 = vshrl.u32 %v426, 7
        %v428 = vsub.s32 %v425, %v427
        %v429 = vrot.slane %v415, %v428
        %v430 = vcombine.high %v422, %v422
        %v431 = vcombine.high %v429, %v429
        %v433 = vunpack.c.l.s4 1966171168
        %v434 = vunpack.c.0.s8 %v433
        %v435 = vlaneseq
        %v436 = vshrl.u32 %v435, 7
        %v437 = vsub.s32 %v434, %v436
        %v438 = vrot.slane %v378, %v437
        %v439 = vcombine.high %v438, %v438
        %v441 = vunpack.c.l.s4 1966171168
        %v442 = vunpack.c.0.s8 %v441
        %v443 = vlaneseq
        %v444 = vshrl.u32 %v443, 7
        %v445 = vsub.s32 %v442, %v444
        %v446 = vrot.slane %v438, %v445
        %v448 = vunpack.c.l.s4 1966171168
        %v449 = vunpack.c.0.s8 %v448
        %v450 = vlaneseq
        %v451 = vshrl.u32 %v450, 7
        %v452 = vsub.s32 %v449, %v451
        %v453 = vrot.slane %v439, %v452
        %v454 = vcombine.high %v446, %v446
        %v455 = vcombine.high %v453, %v453
        %v457 = vunpack.c.l.s4 1966171168
        %v458 = vunpack.c.0.s8 %v457
        %v459 = vlaneseq
        %v460 = vshrl.u32 %v459, 7
        %v461 = vsub.s32 %v458, %v460
        %v462 = vrot.slane %v379, %v461
        %v463 = vcombine.high %v462, %v462
        %v465 = vunpack.c.l.s4 1966171168
        %v466 = vunpack.c.0.s8 %v465
        %v467 = vlaneseq
        %v468 = vshrl.u32 %v467, 7
        %v469 = vsub.s32 %v466, %v468
        %v470 = vrot.slane %v462, %v469
        %v472 = vunpack.c.l.s4 1966171168
        %v473 = vunpack.c.0.s8 %v472
        %v474 = vlaneseq
        %v475 = vshrl.u32 %v474, 7
        %v476 = vsub.s32 %v473, %v475
        %v477 = vrot.slane %v463, %v476
        %v478 = vcombine.high %v470, %v470
        %v479 = vcombine.high %v477, %v477
        %v480 = vlaneseq
        %v481 = vshrl.u32 %v480, 7
        %v482 = vsub.s32 0, %v481
        %v483 = vrot.slane %v398, %v482
        %v484 = vlaneseq
        %v485 = vshrl.u32 %v484, 7
        %v486 = vsub.s32 0, %v485
        %v487 = vrot.slane %v405, %v486
        %v488 = vlaneseq
        %v489 = vshrl.u32 %v488, 7
        %v490 = vsub.s32 0, %v489
        %v491 = vrot.slane %v406, %v490
        %v492 = vlaneseq
        %v493 = vshrl.u32 %v492, 7
        %v494 = vsub.s32 0, %v493
        %v495 = vrot.slane %v407, %v494
        %v496 = vlaneseq
        %v497 = vshrl.u32 %v496, 7
        %v498 = vsub.s32 0, %v497
        %v499 = vrot.slane %v422, %v498
        %v500 = vlaneseq
        %v501 = vshrl.u32 %v500, 7
        %v502 = vsub.s32 0, %v501
        %v503 = vrot.slane %v429, %v502
        %v504 = vlaneseq
        %v505 = vshrl.u32 %v504, 7
        %v506 = vsub.s32 0, %v505
        %v507 = vrot.slane %v430, %v506
        %v508 = vlaneseq
        %v509 = vshrl.u32 %v508, 7
        %v510 = vsub.s32 0, %v509
        %v511 = vrot.slane %v431, %v510
        %v512 = vlaneseq
        %v513 = vshrl.u32 %v512, 7
        %v514 = vsub.s32 0, %v513
        %v515 = vrot.slane %v446, %v514
        %v516 = vlaneseq
        %v517 = vshrl.u32 %v516, 7
        %v518 = vsub.s32 0, %v517
        %v519 = vrot.slane %v453, %v518
        %v520 = vlaneseq
        %v521 = vshrl.u32 %v520, 7
        %v522 = vsub.s32 0, %v521
        %v523 = vrot.slane %v454, %v522
        %v524 = vlaneseq
        %v525 = vshrl.u32 %v524, 7
        %v526 = vsub.s32 0, %v525
        %v527 = vrot.slane %v455, %v526
        %v528 = vlaneseq
        %v529 = vshrl.u32 %v528, 7
        %v530 = vsub.s32 0, %v529
        %v531 = vrot.slane %v470, %v530
        %v532 = vlaneseq
        %v533 = vshrl.u32 %v532, 7
        %v534 = vsub.s32 0, %v533
        %v535 = vrot.slane %v477, %v534
        %v536 = vlaneseq
        %v537 = vshrl.u32 %v536, 7
        %v538 = vsub.s32 0, %v537
        %v539 = vrot.slane %v478, %v538
        %v540 = vlaneseq
        %v541 = vshrl.u32 %v540, 7
        %v542 = vsub.s32 0, %v541
        %v543 = vrot.slane %v479, %v542
        %v560 = vmul.f32 %v312, %v483
        %v561 = vmul.f32 %v313, %v487
        %v562 = vmul.f32 %v314, %v491
        %v563 = vmul.f32 %v315, %v495
        %v564 = vmul.f32 %v316, %v483
        %v565 = vmul.f32 %v317, %v487
        %v566 = vmul.f32 %v318, %v491
        %v567 = vmul.f32 %v319, %v495
        %v568 = vmul.f32 %v320, %v483
        %v569 = vmul.f32 %v321, %v487
        %v570 = vmul.f32 %v322, %v491
        %v571 = vmul.f32 %v323, %v495
        %v572 = vmul.f32 %v324, %v483
        %v573 = vmul.f32 %v325, %v487
        %v574 = vmul.f32 %v326, %v491
        %v575 = vmul.f32 %v327, %v495
        %v576 = vmul.f32 %v328, %v499
        %v577 = vmul.f32 %v329, %v503
        %v578 = vmul.f32 %v330, %v507
        %v579 = vmul.f32 %v331, %v511
        %v580 = vmul.f32 %v332, %v499
        %v581 = vmul.f32 %v333, %v503
        %v582 = vmul.f32 %v334, %v507
        %v583 = vmul.f32 %v335, %v511
        %v584 = vmul.f32 %v336, %v499
        %v585 = vmul.f32 %v337, %v503
        %v586 = vmul.f32 %v338, %v507
        %v587 = vmul.f32 %v339, %v511
        %v588 = vmul.f32 %v340, %v499
        %v589 = vmul.f32 %v341, %v503
        %v590 = vmul.f32 %v342, %v507
        %v591 = vmul.f32 %v343, %v511
        %v592 = vmul.f32 %v344, %v515
        %v593 = vmul.f32 %v345, %v519
        %v594 = vmul.f32 %v346, %v523
        %v595 = vmul.f32 %v347, %v527
        %v596 = vmul.f32 %v348, %v515
        %v597 = vmul.f32 %v349, %v519
        %v598 = vmul.f32 %v350, %v523
        %v599 = vmul.f32 %v351, %v527
        %v600 = vmul.f32 %v352, %v515
        %v601 = vmul.f32 %v353, %v519
        %v602 = vmul.f32 %v354, %v523
        %v603 = vmul.f32 %v355, %v527
        %v604 = vmul.f32 %v356, %v515
        %v605 = vmul.f32 %v357, %v519
        %v606 = vmul.f32 %v358, %v523
        %v607 = vmul.f32 %v359, %v527
        %v608 = vmul.f32 %v360, %v531
        %v609 = vmul.f32 %v361, %v535
        %v610 = vmul.f32 %v362, %v539
        %v611 = vmul.f32 %v363, %v543
        %v612 = vmul.f32 %v364, %v531
        %v613 = vmul.f32 %v365, %v535
        %v614 = vmul.f32 %v366, %v539
        %v615 = vmul.f32 %v367, %v543
        %v616 = vmul.f32 %v368, %v531
        %v617 = vmul.f32 %v369, %v535
        %v618 = vmul.f32 %v370, %v539
        %v619 = vmul.f32 %v371, %v543
        %v620 = vmul.f32 %v372, %v531
        %v621 = vmul.f32 %v373, %v535
        %v622 = vmul.f32 %v374, %v539
        %v623 = vmul.f32 %v375, %v543
        %vm624 = vcmask 27648
        %v625 = vsel %vm624, %v560, 0.0
        %v626 = vsel %vm624, %v561, 0.0
        %v627 = vadd.f32 %v625, %v626
        %v628 = vsel %vm624, %v562, 0.0
        %v629 = vadd.f32 %v627, %v628
        %v630 = vsel %vm624, %v563, 0.0
        %v631 = vadd.f32 %v629, %v630
        %v632 = vsel %vm624, %v564, 0.0
        %v633 = vsel %vm624, %v565, 0.0
        %v634 = vadd.f32 %v632, %v633
        %v635 = vsel %vm624, %v566, 0.0
        %v636 = vadd.f32 %v634, %v635
        %v637 = vsel %vm624, %v567, 0.0
        %v638 = vadd.f32 %v636, %v637
        %v639 = vsel %vm624, %v568, 0.0
        %v640 = vsel %vm624, %v569, 0.0
        %v641 = vadd.f32 %v639, %v640
        %v642 = vsel %vm624, %v570, 0.0
        %v643 = vadd.f32 %v641, %v642
        %v644 = vsel %vm624, %v571, 0.0
        %v645 = vadd.f32 %v643, %v644
        %v646 = vsel %vm624, %v572, 0.0
        %v647 = vsel %vm624, %v573, 0.0
        %v648 = vadd.f32 %v646, %v647
        %v649 = vsel %vm624, %v574, 0.0
        %v650 = vadd.f32 %v648, %v649
        %v651 = vsel %vm624, %v575, 0.0
        %v652 = vadd.f32 %v650, %v651
        %v653 = vsel %vm624, %v576, 0.0
        %v654 = vsel %vm624, %v577, 0.0
        %v655 = vadd.f32 %v653, %v654
        %v656 = vsel %vm624, %v578, 0.0
        %v657 = vadd.f32 %v655, %v656
        %v658 = vsel %vm624, %v579, 0.0
        %v659 = vadd.f32 %v657, %v658
        %v660 = vsel %vm624, %v580, 0.0
        %v661 = vsel %vm624, %v581, 0.0
        %v662 = vadd.f32 %v660, %v661
        %v663 = vsel %vm624, %v582, 0.0
        %v664 = vadd.f32 %v662, %v663
        %v665 = vsel %vm624, %v583, 0.0
        %v666 = vadd.f32 %v664, %v665
        %v667 = vsel %vm624, %v584, 0.0
        %v668 = vsel %vm624, %v585, 0.0
        %v669 = vadd.f32 %v667, %v668
        %v670 = vsel %vm624, %v586, 0.0
        %v671 = vadd.f32 %v669, %v670
        %v672 = vsel %vm624, %v587, 0.0
        %v673 = vadd.f32 %v671, %v672
        %v674 = vsel %vm624, %v588, 0.0
        %v675 = vsel %vm624, %v589, 0.0
        %v676 = vadd.f32 %v674, %v675
        %v677 = vsel %vm624, %v590, 0.0
        %v678 = vadd.f32 %v676, %v677
        %v679 = vsel %vm624, %v591, 0.0
        %v680 = vadd.f32 %v678, %v679
        %v681 = vsel %vm624, %v592, 0.0
        %v682 = vsel %vm624, %v593, 0.0
        %v683 = vadd.f32 %v681, %v682
        %v684 = vsel %vm624, %v594, 0.0
        %v685 = vadd.f32 %v683, %v684
        %v686 = vsel %vm624, %v595, 0.0
        %v687 = vadd.f32 %v685, %v686
        %v688 = vsel %vm624, %v596, 0.0
        %v689 = vsel %vm624, %v597, 0.0
        %v690 = vadd.f32 %v688, %v689
        %v691 = vsel %vm624, %v598, 0.0
        %v692 = vadd.f32 %v690, %v691
        %v693 = vsel %vm624, %v599, 0.0
        %v694 = vadd.f32 %v692, %v693
        %v695 = vsel %vm624, %v600, 0.0
        %v696 = vsel %vm624, %v601, 0.0
        %v697 = vadd.f32 %v695, %v696
        %v698 = vsel %vm624, %v602, 0.0
        %v699 = vadd.f32 %v697, %v698
        %v700 = vsel %vm624, %v603, 0.0
        %v701 = vadd.f32 %v699, %v700
        %v702 = vsel %vm624, %v604, 0.0
        %v703 = vsel %vm624, %v605, 0.0
        %v704 = vadd.f32 %v702, %v703
        %v705 = vsel %vm624, %v606, 0.0
        %v706 = vadd.f32 %v704, %v705
        %v707 = vsel %vm624, %v607, 0.0
        %v708 = vadd.f32 %v706, %v707
        %v709 = vsel %vm624, %v608, 0.0
        %v710 = vsel %vm624, %v609, 0.0
        %v711 = vadd.f32 %v709, %v710
        %v712 = vsel %vm624, %v610, 0.0
        %v713 = vadd.f32 %v711, %v712
        %v714 = vsel %vm624, %v611, 0.0
        %v715 = vadd.f32 %v713, %v714
        %v716 = vsel %vm624, %v612, 0.0
        %v717 = vsel %vm624, %v613, 0.0
        %v718 = vadd.f32 %v716, %v717
        %v719 = vsel %vm624, %v614, 0.0
        %v720 = vadd.f32 %v718, %v719
        %v721 = vsel %vm624, %v615, 0.0
        %v722 = vadd.f32 %v720, %v721
        %v723 = vsel %vm624, %v616, 0.0
        %v724 = vsel %vm624, %v617, 0.0
        %v725 = vadd.f32 %v723, %v724
        %v726 = vsel %vm624, %v618, 0.0
        %v727 = vadd.f32 %v725, %v726
        %v728 = vsel %vm624, %v619, 0.0
        %v729 = vadd.f32 %v727, %v728
        %v730 = vsel %vm624, %v620, 0.0
        %v731 = vsel %vm624, %v621, 0.0
        %v732 = vadd.f32 %v730, %v731
        %v733 = vsel %vm624, %v622, 0.0
        %v734 = vadd.f32 %v732, %v733
        %v735 = vsel %vm624, %v623, 0.0
        %v736 = vadd.f32 %v734, %v735
        %v737 = vsel %vm624, %v631, 0.0
        %738 = vadd.xlane.f32.xlu0 %v737
        %v739 = vpop.xlane.xlu0 %738
        %v740 = vsel %vm624, %v638, 0.0
        %741 = vadd.xlane.f32.xlu0 %v740
        %v742 = vpop.xlane.xlu0 %741
        %v743 = vsel %vm624, %v645, 0.0
        %744 = vadd.xlane.f32.xlu0 %v743
        %v745 = vpop.xlane.xlu0 %744
        %v746 = vsel %vm624, %v652, 0.0
        %747 = vadd.xlane.f32.xlu0 %v746
        %v748 = vpop.xlane.xlu0 %747
        %v749 = vsel %vm624, %v659, 0.0
        %750 = vadd.xlane.f32.xlu0 %v749
        %v751 = vpop.xlane.xlu0 %750
        %v752 = vsel %vm624, %v666, 0.0
        %753 = vadd.xlane.f32.xlu0 %v752
        %v754 = vpop.xlane.xlu0 %753
        %v755 = vsel %vm624, %v673, 0.0
        %756 = vadd.xlane.f32.xlu0 %v755
        %v757 = vpop.xlane.xlu0 %756
        %v758 = vsel %vm624, %v680, 0.0
        %759 = vadd.xlane.f32.xlu0 %v758
        %v760 = vpop.xlane.xlu0 %759
        %v761 = vsel %vm624, %v687, 0.0
        %762 = vadd.xlane.f32.xlu0 %v761
        %v763 = vpop.xlane.xlu0 %762
        %v764 = vsel %vm624, %v694, 0.0
        %765 = vadd.xlane.f32.xlu0 %v764
        %v766 = vpop.xlane.xlu0 %765
        %v767 = vsel %vm624, %v701, 0.0
        %768 = vadd.xlane.f32.xlu0 %v767
        %v769 = vpop.xlane.xlu0 %768
        %v770 = vsel %vm624, %v708, 0.0
        %771 = vadd.xlane.f32.xlu0 %v770
        %v772 = vpop.xlane.xlu0 %771
        %v773 = vsel %vm624, %v715, 0.0
        %774 = vadd.xlane.f32.xlu0 %v773
        %v775 = vpop.xlane.xlu0 %774
        %v776 = vsel %vm624, %v722, 0.0
        %777 = vadd.xlane.f32.xlu0 %v776
        %v778 = vpop.xlane.xlu0 %777
        %v779 = vsel %vm624, %v729, 0.0
        %780 = vadd.xlane.f32.xlu0 %v779
        %v781 = vpop.xlane.xlu0 %780
        %v782 = vsel %vm624, %v736, 0.0
        %783 = vadd.xlane.f32.xlu0 %v782
        %v784 = vpop.xlane.xlu0 %783
        %v801 = vlaneseq
        %v802 = vand.u32 %v801, 127
        %v803 = vlaneseq
        %v804 = vshrl.u32 %v803, 7
        %v805 = vsub.s32 %v802, %v804
        %v806 = vrot.slane %v739, %v805
        %v807 = vlaneseq
        %v808 = vshrl.u32 %v807, 7
        %v809 = vsub.s32 %v802, %v808
        %v810 = vrot.slane %v742, %v809
        %v811 = vlaneseq
        %v812 = vshrl.u32 %v811, 7
        %v813 = vsub.s32 %v802, %v812
        %v814 = vrot.slane %v745, %v813
        %v815 = vlaneseq
        %v816 = vshrl.u32 %v815, 7
        %v817 = vsub.s32 %v802, %v816
        %v818 = vrot.slane %v748, %v817
        %v819 = vlaneseq
        %v820 = vshrl.u32 %v819, 7
        %v821 = vsub.s32 %v802, %v820
        %v822 = vrot.slane %v751, %v821
        %v823 = vlaneseq
        %v824 = vshrl.u32 %v823, 7
        %v825 = vsub.s32 %v802, %v824
        %v826 = vrot.slane %v754, %v825
        %v827 = vlaneseq
        %v828 = vshrl.u32 %v827, 7
        %v829 = vsub.s32 %v802, %v828
        %v830 = vrot.slane %v757, %v829
        %v831 = vlaneseq
        %v832 = vshrl.u32 %v831, 7
        %v833 = vsub.s32 %v802, %v832
        %v834 = vrot.slane %v760, %v833
        %v835 = vlaneseq
        %v836 = vshrl.u32 %v835, 7
        %v837 = vsub.s32 %v802, %v836
        %v838 = vrot.slane %v763, %v837
        %v839 = vlaneseq
        %v840 = vshrl.u32 %v839, 7
        %v841 = vsub.s32 %v802, %v840
        %v842 = vrot.slane %v766, %v841
        %v843 = vlaneseq
        %v844 = vshrl.u32 %v843, 7
        %v845 = vsub.s32 %v802, %v844
        %v846 = vrot.slane %v769, %v845
        %v847 = vlaneseq
        %v848 = vshrl.u32 %v847, 7
        %v849 = vsub.s32 %v802, %v848
        %v850 = vrot.slane %v772, %v849
        %v851 = vlaneseq
        %v852 = vshrl.u32 %v851, 7
        %v853 = vsub.s32 %v802, %v852
        %v854 = vrot.slane %v775, %v853
        %v855 = vlaneseq
        %v856 = vshrl.u32 %v855, 7
        %v857 = vsub.s32 %v802, %v856
        %v858 = vrot.slane %v778, %v857
        %v859 = vlaneseq
        %v860 = vshrl.u32 %v859, 7
        %v861 = vsub.s32 %v802, %v860
        %v862 = vrot.slane %v781, %v861
        %v863 = vlaneseq
        %v864 = vshrl.u32 %v863, 7
        %v865 = vsub.s32 %v802, %v864
        %v866 = vrot.slane %v784, %v865
        %vm867 = vcmask 1041409
        %v868 = vsel %vm867, %v810, %v806
        %vm869 = vcmask 1042434
        %v870 = vsel %vm869, %v814, %v868
        %vm871 = vcmask 1043459
        %v872 = vsel %vm871, %v818, %v870
        %v873 = vsel %vm867, %v826, %v822
        %v874 = vsel %vm869, %v830, %v873
        %v875 = vsel %vm871, %v834, %v874
        %v876 = vsel %vm867, %v842, %v838
        %v877 = vsel %vm869, %v846, %v876
        %v878 = vsel %vm871, %v850, %v877
        %v879 = vsel %vm867, %v858, %v854
        %v880 = vsel %vm869, %v862, %v879
        %v881 = vsel %vm871, %v866, %v880
        %v886 = vcombine.low %v872, %v878
        %v888 = vunpack.c.l.s4 1983009808
        %v889 = vunpack.c.0.s8 %v888
        %v890 = vlaneseq
        %v891 = vshrl.u32 %v890, 7
        %v892 = vsub.s32 %v889, %v891
        %v893 = vrot.slane %v886, %v892
        %v894 = vcombine.low %v875, %v881
        %v896 = vunpack.c.l.s4 1983009808
        %v897 = vunpack.c.0.s8 %v896
        %v898 = vlaneseq
        %v899 = vshrl.u32 %v898, 7
        %v900 = vsub.s32 %v897, %v899
        %v901 = vrot.slane %v894, %v900
        %v902 = vcombine.low %v893, %v901
        %v903 = vcombine.high %v893, %v901
        %v905 = vunpack.c.l.s4 1934713408
        %v906 = vunpack.c.0.s8 %v905
        %v907 = vlaneseq
        %v908 = vshrl.u32 %v907, 7
        %v909 = vsub.s32 %v906, %v908
        %v910 = vrot.slane %v902, %v909
        %v912 = vunpack.c.l.s4 1934713408
        %v913 = vunpack.c.0.s8 %v912
        %v914 = vlaneseq
        %v915 = vshrl.u32 %v914, 7
        %v916 = vsub.s32 %v913, %v915
        %v917 = vrot.slane %v903, %v916
        %v918 = vcombine.high %v910, 0.0
        %v919 = vcombine.high %v917, 0.0
        %921 = vrot.lane.b32.xlu0 %v918, 4
        %v922 = vpop.permute.xlu0 %921
        %925 = vrot.lane.b32.xlu0 %v917, 8
        %v926 = vpop.permute.xlu0 %925
        %929 = vrot.lane.b32.xlu0 %v919, 12
        %v930 = vpop.permute.xlu0 %929
        %vm932 = vcmask 31744
        %v933 = vsel %vm932, %v910, %v922
        %vm934 = vcmask 64512
        %v935 = vsel %vm934, %v933, %v926
        %vm936 = vcmask 97280
        %v937 = vsel %vm936, %v935, %v930
        %v938 = vld [vmem:[%s2] sm:$0xf]
        %940 = vset.pattern.permute.xlu0 0
        %941 = vperm.xlu0 %940, %v938
        %v942 = vpop.permute.xlu0 %941
        %v944 = vadd.f32 %v937, %v942
        %vm945 = vcmask 125952
        %v946 = vsel %vm945, %v944, 0.0
        %v947 = vrot.slane %v946, 4
        %v948 = vadd.f32 %v946, %v947
        %v949 = vrot.slane %v948, 2
        %v950 = vadd.f32 %v948, %v949
        %v951 = vrot.slane %v950, 1
        %v952 = vadd.f32 %v950, %v951
        %v953 = vrcp.pop 4.0
        %v954 = vmul.f32 %v952, %v953
        %v955 = vmul.f32 %v944, %v944
        %v956 = vsel %vm945, %v955, 0.0
        %v957 = vrot.slane %v956, 4
        %v958 = vadd.f32 %v956, %v957
        %v959 = vrot.slane %v958, 2
        %v960 = vadd.f32 %v958, %v959
        %v961 = vrot.slane %v960, 1
        %v962 = vadd.f32 %v960, %v961
        %v963 = vmul.f32 %v962, %v953
        %v964 = vmul.f32 %v954, %v954
        %v965 = vsub.f32 %v963, %v964
        %v966 = vsub.f32 %v944, %v954
        %v967 = vadd.f32 %v965, 1e-05
        %v968 = vrsqrt.pop %v967
        %v969 = vmul.f32 %v966, %v968
        %970 = vxpose.xlu0.b32.start [1/16] %v969, 128
        %971 = vxpose.xlu0.b32.cont [2/16] 0.0, 128
        %972 = vxpose.xlu0.b32.cont [3/16] 0.0, 128
        %973 = vxpose.xlu0.b32.cont [4/16] 0.0, 128
        %974 = vxpose.xlu0.b32.cont [5/16] 0.0, 128
        %975 = vxpose.xlu0.b32.cont [6/16] 0.0, 128
        %976 = vxpose.xlu0.b32.cont [7/16] 0.0, 128
        %977 = vxpose.xlu0.b32.cont [8/16] 0.0, 128
        %978 = vxpose.xlu0.b32.cont [9/16] 0.0, 128
        %979 = vxpose.xlu0.b32.cont [10/16] 0.0, 128
        %980 = vxpose.xlu0.b32.cont [11/16] 0.0, 128
        %981 = vxpose.xlu0.b32.cont [12/16] 0.0, 128
        %982 = vxpose.xlu0.b32.cont [13/16] 0.0, 128
        %983 = vxpose.xlu0.b32.cont [14/16] 0.0, 128
        %984 = vxpose.xlu0.b32.cont [15/16] 0.0, 128
        %985 = vxpose.xlu0.b32.end [16/16] 0.0, 128
        %v986 = vpop.trf.xlu0
        %v987 = vpop.trf.xlu0
        %v988 = vpop.trf.xlu0
        %v989 = vpop.trf.xlu0
        %v990 = vpop.trf.xlu0
        %v991 = vpop.trf.xlu0
        %v992 = vpop.trf.xlu0
        %v993 = vpop.trf.xlu0
        %v994 = vpop.trf.xlu0
        %v995 = vpop.trf.xlu0
        %v996 = vpop.trf.xlu0
        %v997 = vpop.trf.xlu0
        %v998 = vpop.trf.xlu0
        %v999 = vpop.trf.xlu0
        %v1000 = vpop.trf.xlu0
        %v1001 = vpop.trf.xlu0
        %v1002 = vld [vmem:[%s3] sm:$0xf]
        %v1003 = vld [vmem:[%s4] sm:$0x1]
        %v1005 = vlaneseq
        %v1006 = vshrl.u32 %v1005, 7
        %v1007 = vsub.s32 0, %v1006
        %v1008 = vrot.slane %v1003, %v1007
        %v1011 = vsel %vm932, %v986, 0
        %v1014 = vsel %vm932, %v987, 0
        %vm1016 = vcmask 1043456
        %v1018 = vsel %vm1016, %v1002, 0
        %1020 = vmatprep.subr.mxu0 0.0
        %1021 = vmatpush1.msra.mxu0 %v1018
        %1022 = vmatprep.subr.mxu0 0.0
        %1023 = vmatpush1.msra.mxu0 0.0
        %1024 = vmatprep.subr.mxu0 0.0
        %1025 = vmatpush1.msra.mxu0 0.0
        %1026 = vmatprep.subr.mxu0 0.0
        %1027 = vmatpush1.msra.mxu0 0.0
        %1028 = vmatprep.subr.mxu0 0.0
        %1029 = vmatpush1.msra.mxu0 0.0
        %1030 = vmatprep.subr.mxu0 0.0
        %1031 = vmatpush1.msra.mxu0 0.0
        %1032 = vmatprep.subr.mxu0 0.0
        %1033 = vmatpush1.msra.mxu0 0.0
        %1034 = vmatprep.subr.mxu0 0.0
        %1035 = vmatpush1.msra.mxu0 0.0
        %1036 = vmatprep.subr.mxu0 0.0
        %1037 = vmatpush1.msra.mxu0 0.0
        %1038 = vmatprep.subr.mxu0 0.0
        %1039 = vmatpush1.msra.mxu0 0.0
        %1040 = vmatprep.subr.mxu0 0.0
        %1041 = vmatpush1.msra.mxu0 0.0
        %1042 = vmatprep.subr.mxu0 0.0
        %1043 = vmatpush1.msra.mxu0 0.0
        %1044 = vmatprep.subr.mxu0 0.0
        %1045 = vmatpush1.msra.mxu0 0.0
        %1046 = vmatprep.subr.mxu0 0.0
        %1047 = vmatpush1.msra.mxu0 0.0
        %1048 = vmatprep.subr.mxu0 0.0
        %1049 = vmatpush1.msra.mxu0 0.0
        %1050 = vmatprep.subr.mxu0 0.0
        %1051 = vmatpush1.msra.mxu0 0.0
        %1052 = vmatprep.subr.mxu0 0.0
        %1053 = vmatpush1.msra.mxu0 0.0
        %1054 = vmatprep.subr.mxu0 0.0
        %1055 = vmatpush1.msra.mxu0 0.0
        %1056 = vmatprep.subr.mxu0 0.0
        %1057 = vmatpush1.msra.mxu0 0.0
        %1058 = vmatprep.subr.mxu0 0.0
        %1059 = vmatpush1.msra.mxu0 0.0
        %1060 = vmatprep.subr.mxu0 0.0
        %1061 = vmatpush1.msra.mxu0 0.0
        %1062 = vmatprep.subr.mxu0 0.0
        %1063 = vmatpush1.msra.mxu0 0.0
        %1064 = vmatprep.subr.mxu0 0.0
        %1065 = vmatpush1.msra.mxu0 0.0
        %1066 = vmatprep.subr.mxu0 0.0
        %1067 = vmatpush1.msra.mxu0 0.0
        %1068 = vmatprep.subr.mxu0 0.0
        %1069 = vmatpush1.msra.mxu0 0.0
        %1070 = vmatprep.subr.mxu0 0.0
        %1071 = vmatpush1.msra.mxu0 0.0
        %1072 = vmatprep.subr.mxu0 0.0
        %1073 = vmatpush1.msra.mxu0 0.0
        %1074 = vmatprep.subr.mxu0 0.0
        %1075 = vmatpush1.msra.mxu0 0.0
        %1076 = vmatprep.subr.mxu0 0.0
        %1077 = vmatpush1.msra.mxu0 0.0
        %1078 = vmatprep.subr.mxu0 0.0
        %1079 = vmatpush1.msra.mxu0 0.0
        %1080 = vmatprep.subr.mxu0 0.0
        %1081 = vmatpush1.msra.mxu0 0.0
        %1082 = vmatprep.subr.mxu0 0.0
        %1083 = vmatpush1.msra.mxu0 0.0
        %1084 = vmatprep.mubr.f32.mxu0 0.0
        %1085 = vmatmul.mubr.f32.gmra.mrb[0].mxu0 %v1011
        %v1086 = vpop.f32.mrb[0].mxu0
        %v1087 = vadd.f32 %v1008, %v1086
        %v1088 = vpop.f32.mrb[0].mxu0
        %1089 = vmatprep.mubr.f32.mxu0 0.0
        %1090 = vmatmul.mubr.f32.gmra.mrb[0].mxu0 %v1014
        %v1091 = vpop.f32.mrb[0].mxu0
        %v1092 = vadd.f32 %v1008, %v1091
        %v1093 = vpop.f32.mrb[0].mxu0
        %1094 = vdwg.mxu0
        %vm1095 = vcmask 261120
        %v1096 = vsel %vm1095, %v1087, 0.0
        %1097 = vadd.xlane.f32.xlu0 %v1096
        %v1098 = vpop.xlane.xlu0 %1097
        %v1099 = vsel %vm1095, %v1092, 0.0
        %1100 = vadd.xlane.f32.xlu0 %v1099
        %v1101 = vpop.xlane.xlu0 %1100
        %v1102 = vrcp.pop 32.0
        %v1103 = vmul.f32 %v1098, %v1102
        %v1104 = vmul.f32 %v1101, %v1102
        %v1105 = vmul.f32 %v1087, %v1087
        %v1106 = vmul.f32 %v1092, %v1092
        %v1107 = vsel %vm1095, %v1105, 0.0
        %1108 = vadd.xlane.f32.xlu0 %v1107
        %v1109 = vpop.xlane.xlu0 %1108
        %v1110 = vsel %vm1095, %v1106, 0.0
        %1111 = vadd.xlane.f32.xlu0 %v1110
        %v1112 = vpop.xlane.xlu0 %1111
        %v1113 = vmul.f32 %v1109, %v1102
        %v1114 = vmul.f32 %v1112, %v1102
        %v1115 = vmul.f32 %v1103, %v1103
        %v1116 = vmul.f32 %v1104, %v1104
        %v1117 = vsub.f32 %v1113, %v1115
        %v1118 = vsub.f32 %v1114, %v1116
        %v1119 = vsub.f32 %v1087, %v1103
        %v1120 = vsub.f32 %v1092, %v1104
        %v1121 = vadd.f32 %v1117, 1e-05
        %v1122 = vadd.f32 %v1118, 1e-05
        %v1123 = vrsqrt.pop %v1121
        %v1124 = vrsqrt.pop %v1122
        %v1125 = vmul.f32 %v1119, %v1123
        %v1126 = vmul.f32 %v1120, %v1124
        %v1127 = vld [vmem:[%s5] sm:$0x1]
        %v1129 = vlaneseq
        %v1130 = vshrl.u32 %v1129, 7
        %v1131 = vsub.s32 0, %v1130
        %v1132 = vrot.slane %v1127, %v1131
        %v1134 = vmul.f32 %v1125, %v1132
        %v1135 = vmul.f32 %v1126, %v1132
        %v1136 = vld [vmem:[%s6] sm:$0xff]
        %v1137 = vld [vmem:[%s6 + $0x8] sm:$0xff]
        %v1138 = vadd.f32 %v1134, %v1136
        %v1139 = vadd.f32 %v1135, %v1137
        %1140 = vst.msk [vmem:[%s311] sm:$0xff] %vm1095, %v1138
        %1141 = vst.msk [vmem:[%s311 + $0x8] sm:$0xff] %vm1095, %v1139
        %s1142 = sand.u32 %s185, 1
        %s1143 = scalar_lea.sflag [#allocation4], %s1142
        %s1144 = sand.u32 %s185, 1
        %s1145 = smul.addr %s1144, 16
        %s1146 = scalar_lea.vmem [#allocation7], %s1145
        // Predicated region
        $region57: #{tpu_custom_call.1} parent=47 // pred_check
          %p1147 = pneg %p195
        $region58: #{tpu_custom_call.1} parent=47 // pred_check_branch
          %1149 = sbr.rel (%p1147) target = $region60
        $region59: #{tpu_custom_call.1} parent=47 // pred_region
          %s1151 = ssub.s32 256, 256
          %1152 = vsyncadd %s1143, %s1151
          %s1153 = smul.addr %s25, 2
          %s1154 = smul.addr %s1153, 128
          %s1155 = scalar_lea.hbm %s7, %s1154
          %s1156 = sshll.u32 %s1146, 4
          %s1157 = int_to_ptr.vmem [resolvable:$true] %s1156
          %1162 = dma.vmem_to_hbm [thread:$0]  %s1157, 256, %s1155, %s1143, 128, 128, 8
        $region60: #{tpu_custom_call.1} parent=47 // pred_fallthru
          _
      $region48: #{tpu_custom_call.1} parent=5 // pred_fallthru
        _
      %p1163 = scmp.le.s32.totalorder 2, %s20
      // Predicated region
      $region61: #{tpu_custom_call.1} parent=5 // pred_check
        %p1164 = pneg %p1163
      $region62: #{tpu_custom_call.1} parent=5 // pred_check_branch
        %1166 = sbr.rel (%p1164) target = $region64
      $region63: #{tpu_custom_call.1} parent=5 // pred_region
        %s1167 = ssub.s32 %s20, 2
        // Predicated region
        $region65: #{tpu_custom_call.1} parent=63 // pred_check
          %p1168 = pneg %p201
        $region66: #{tpu_custom_call.1} parent=63 // pred_check_branch
          %1170 = sbr.rel (%p1168) target = $region68
        $region67: #{tpu_custom_call.1} parent=63 // pred_region
          %s1171 = sand.u32 %s186, 1
          %s1172 = scalar_lea.sflag [#allocation4], %s1171
          %s1173 = sand.u32 %s186, 1
          %s1174 = smul.addr %s1173, 16
          %s1175 = scalar_lea.vmem [#allocation7], %s1174
          %1176 = dma.done %s1172, 256
        $region68: #{tpu_custom_call.1} parent=63 // pred_fallthru
          _
      $region64: #{tpu_custom_call.1} parent=5 // pred_fallthru
        _
    $region6: #{tpu_custom_call.1} parent=1 // loop_footer
      %s24 = sadd.s32 1, %s20
    $region7: #{tpu_custom_call.1} parent=1 // loop_footer_branch
      %19 = sbr.rel target = $region3
    $region8: #{tpu_custom_call.1} parent=1 // loop_exit
      _
    %1177 = vsyncpa [#allocation3], 1
    %s1178 = scalar_lea.sflag [#allocation3], 1
    %1179 = vsyncpa %s1178, 1
    %1180 = vsyncpa [#allocation6], 1
    %1181 = vsyncpa [#allocation4], 1
    %s1182 = scalar_lea.sflag [#allocation4], 1
    %1183 = vsyncpa %s1182, 1

</llo_original>
